<compile_context>
chip_gen: v6e
topology: v6e:2x2x1
jax: 0.10.0
libtpu: 0.0.40
codegen_flags: <defaults>
</compile_context>

<pallas_src>
import functools
import math

import jax
import jax.numpy as jnp
from jax.experimental import pallas as pl
from jax.experimental.pallas import tpu as pltpu


_SQRT_2_OVER_PI = math.sqrt(2.0 / math.pi)
_SUB = 8      # sublane granularity
_LANE = 128   # lane width


def _round_up(x, m):
    return ((x + m - 1) // m) * m


def _detect_buffered():
    """One-time (import-time) probe for BlockSpec(pipeline_mode=pl.Buffered(n))."""
    if not hasattr(pl, "Buffered"):
        return False
    try:
        pl.BlockSpec((8, 128), lambda i: (0, 0), pipeline_mode=pl.Buffered(1))
        return True
    except Exception:
        return False


_HAS_BUFFERED = _detect_buffered()


@functools.lru_cache(maxsize=1)
def _vmem_budget_bytes():
    """~75% of the per-core VMEM capacity (generation-aware), queried once."""
    cap = 64 << 20  # conservative fallback (v7x per-TensorCore)
    try:
        info = pltpu.get_tpu_info()
        cap = int(getattr(info, "vmem_capacity_bytes", cap)) or cap
    except Exception:
        pass
    return int(cap * 0.75)


def _gelu_tanh_f32(x):
    # tanh-approx gelu, matching the PyTorch reference.  Kept in f32 and using
    # x*x*x (pure VPU muls) instead of x**3; tanh lands on the EUP slot.
    x3 = x * x * x
    return 0.5 * x * (1.0 + jnp.tanh(_SQRT_2_OVER_PI * (x + 0.044715 * x3)))


def mlp_kernel(x_ref, w1_ref, b1_ref, w2_ref, b2_ref, o_ref, acc_ref):
    # Fused MLP on the current (row tile, n_state tile):
    #   h_k = gelu(x @ w1[:, k] + b1[k]) ;  acc += h_k @ w2[k, :]
    #   on last k:  o = acc + b2
    # bf16 MXU operands, f32 accumulation, f32 bias/gelu math (v5e has no bf16
    # VPU/EUP path).  x arrives f32 from HBM and is cast in-register.
    k = pl.program_id(1)

    @pl.when(k == 0)
    def _():
        acc_ref[...] = jnp.zeros_like(acc_ref)

    x = x_ref[...].astype(jnp.bfloat16)                                # (tm, dim)
    h = jnp.dot(x, w1_ref[...], preferred_element_type=jnp.float32)    # (tm, tn) f32
    h = h + b1_ref[...]                                                # broadcast (1, tn)
    h = _gelu_tanh_f32(h)
    acc_ref[...] += jnp.dot(h.astype(jnp.bfloat16), w2_ref[...],
                            preferred_element_type=jnp.float32)        # (tm, dim) f32

    @pl.when(k == pl.num_programs(1) - 1)
    def _():
        o_ref[...] = (acc_ref[...] + b2_ref[...]).astype(o_ref.dtype)
    # TODO(synk): dropout omitted (identity at inference; no RNG mask applied).


def prepare_mlp_params(w1, b1, w2, b2):
    """One-time weight packing: pad n_state to a 128 multiple, bf16 weights,
    f32 row-vector biases.  Do this at model init, not per forward call."""
    dim, n_state = w1.shape
    ns_p = _round_up(n_state, _LANE)
    w1_p = jnp.pad(w1, ((0, 0), (0, ns_p - n_state))).astype(jnp.bfloat16)
    w2_p = jnp.pad(w2, ((0, ns_p - n_state), (0, 0))).astype(jnp.bfloat16)
    b1_p = jnp.pad(b1.astype(jnp.float32), (0, ns_p - n_state)).reshape(1, ns_p)
    b2_p = b2.astype(jnp.float32).reshape(1, dim)
    return w1_p, b1_p, w2_p, b2_p


def _estimate_vmem(tm, tn, num_k, dim, x_itemsize, out_itemsize, single_buf_weights):
    wbuf = 1 if (single_buf_weights and num_k == 1) else 2
    weights = wbuf * 2 * (dim * tn * 2)          # bf16 w1 (dim,tn) + w2 (tn,dim) tiles
    biases = wbuf * tn * 4 + dim * 4
    x_io = 2 * tm * dim * x_itemsize             # double-buffered f32 row tile
    out_io = 2 * tm * dim * out_itemsize
    acc = tm * dim * 4                            # f32 accumulator scratch
    hidden = tm * tn * (4 + 2)                    # f32 h + bf16 recast
    return weights + biases + x_io + out_io + acc + hidden


def _choose_tiles(M, dim, ns_p, x_itemsize, out_itemsize, tm=None, tn=None):
    budget = _vmem_budget_bytes()

    if tm is None:
        tm = min(512, _round_up(M, _SUB))
        # Ensure >= 2 row-grid steps when possible so v7x's two TensorCores both
        # get work (cost on 1-TC parts: one extra ~0.35us grid step).
        if M > _SUB and pl.cdiv(M, tm) < 2:
            tm = _round_up(pl.cdiv(M, 2), _SUB)
    tm = max(_SUB, _round_up(tm, _SUB))

    if tn is None:
        # tn must be a multiple of 128 that divides ns_p (so every n_state tile
        # is full; zero padding in the packed weights keeps the math exact).
        q = ns_p // _LANE
        cands = sorted({_LANE * k for k in range(1, q + 1) if q % k == 0},
                       reverse=True)
        tn = cands[-1]
        for c in cands:  # prefer fully resident weights (largest tn that fits)
            if _estimate_vmem(tm, c, ns_p // c, dim, x_itemsize, out_itemsize,
                              _HAS_BUFFERED) <= budget:
                tn = c
                break
    else:
        tn = min(_round_up(tn, _LANE), ns_p)
        while ns_p % tn != 0:
            tn -= _LANE

    # If still over budget, shrink the row tile.
    while tm > _SUB and _estimate_vmem(tm, tn, ns_p // tn, dim, x_itemsize,
                                       out_itemsize, _HAS_BUFFERED) > budget:
        tm = max(_SUB, _round_up(tm // 2, _SUB))
    return tm, tn


@functools.lru_cache(maxsize=None)
def _build_mlp_call(M, dim, ns_p, tm, tn, out_dtype_name):
    num_k = ns_p // tn
    grid = (pl.cdiv(M, tm), num_k)

    def spec(shape, index_map, constant):
        # Constant-index operands never change across grid steps: single-buffer
        # them to halve their resident VMEM (matters most on v7x's 64 MiB).
        if constant and _HAS_BUFFERED:
            return pl.BlockSpec(shape, index_map, pipeline_mode=pl.Buffered(1))
        return pl.BlockSpec(shape, index_map)

    weights_const = (num_k == 1)
    in_specs = [
        # TODO(synk): on v5e consider pl.Buffered(3) here if profiles show exposed x DMA.
        pl.BlockSpec((tm, dim), lambda i, k: (i, 0)),        # x row tile (f32)
        spec((dim, tn), lambda i, k: (0, k), weights_const),  # w1 tile (bf16)
        spec((1, tn), lambda i, k: (0, k), weights_const),    # b1 tile (f32)
        spec((tn, dim), lambda i, k: (k, 0), weights_const),  # w2 tile (bf16)
        spec((1, dim), lambda i, k: (0, 0), True),            # b2 (constant)
    ]
    return pl.pallas_call(
        mlp_kernel,
        out_shape=jax.ShapeDtypeStruct((M, dim), jnp.dtype(out_dtype_name)),
        grid_spec=pltpu.PrefetchScalarGridSpec(
            num_scalar_prefetch=0,
            grid=grid,
            in_specs=in_specs,
            out_specs=pl.BlockSpec((tm, dim), lambda i, k: (i, 0)),
            scratch_shapes=[pltpu.VMEM((tm, dim), jnp.float32)],
        ),
        compiler_params=pltpu.CompilerParams(
            dimension_semantics=("parallel", "arbitrary"),   # rows megacore-split
            vmem_limit_bytes=max(32 << 20, _vmem_budget_bytes()),
        ),
    )


@functools.partial(jax.jit, static_argnames=("tm", "tn"))
def _mlp_forward_jit(x, w1_p, b1_p, w2_p, b2_p, *, tm, tn):
    B, S, dim = x.shape
    M = B * S
    ns_p = w1_p.shape[1]
    call = _build_mlp_call(M, dim, ns_p, tm, tn, str(x.dtype))
    out2d = call(x.reshape(M, dim), w1_p, b1_p, w2_p, b2_p)
    return out2d.reshape(B, S, dim)


def mlp_forward(x, packed_params, *, tm=None, tn=None):
    """x: (B, S, dim) -> (B, S, dim).  GPT MLP: Conv1D -> gelu -> Conv1D.

    `packed_params` comes from prepare_mlp_params() (done once at init)."""
    w1_p, b1_p, w2_p, b2_p = packed_params
    B, S, dim = x.shape
    M = B * S
    ns_p = w1_p.shape[1]
    itemsize = jnp.dtype(x.dtype).itemsize
    tm, tn = _choose_tiles(M, dim, ns_p, itemsize, itemsize, tm, tn)
    return _mlp_forward_jit(x, w1_p, b1_p, w2_p, b2_p, tm=tm, tn=tn)


def mlp_reference(x, w1, b1, w2, b2):
    h = _gelu_tanh_f32(jnp.einsum("bsd,dn->bsn", x, w1) + b1)
    return jnp.einsum("bsn,nd->bsd", h, w2) + b2


if __name__ == "__main__":
    # Small shapes consistent with the module: dim=32, n_state=4*dim=128.
    B, S, dim, n_state = 2, 8, 32, 128

    key = jax.random.PRNGKey(0)
    kx, k1, k2 = jax.random.split(key, 3)

    x = jax.random.normal(kx, (B, S, dim), dtype=jnp.float32)
    # Conv1D init: normal(std=0.02) weights, zero biases.
    w1 = 0.02 * jax.random.normal(k1, (dim, n_state), dtype=jnp.float32)
    b1 = jnp.zeros((n_state,), dtype=jnp.float32)
    w2 = 0.02 * jax.random.normal(k2, (n_state, dim), dtype=jnp.float32)
    b2 = jnp.zeros((dim,), dtype=jnp.float32)

    # One-time weight packing (bf16 cast + n_state pad), outside the hot path.
    packed = prepare_mlp_params(w1, b1, w2, b2)
    packed = jax.block_until_ready(packed)

    out = mlp_forward(x, packed)
    out = jax.block_until_ready(out)

    ref = mlp_reference(x, w1, b1, w2, b2)
    assert out.shape == (B, S, dim)
    # bf16 MXU operands with f32 accumulation: compare against the f32
    # reference with a correspondingly loosened tolerance (documented choice).
    assert jnp.allclose(out, ref, atol=5e-3, rtol=5e-2), "mismatch vs reference"

    print("KERNEL_OK")
</pallas_src>

<mosaic_0001>
module attributes {stable_mosaic.version = 11 : i64} {
  func.func @mlp_kernel(%arg0: i32, %arg1: i32, %arg2: memref<8x32xf32, #tpu.memory_space<vmem>>, %arg3: memref<32x128xbf16, #tpu.memory_space<vmem>>, %arg4: memref<1x128xf32, #tpu.memory_space<vmem>>, %arg5: memref<128x32xbf16, #tpu.memory_space<vmem>>, %arg6: memref<1x32xf32, #tpu.memory_space<vmem>>, %arg7: memref<8x32xf32, #tpu.memory_space<vmem>>, %arg8: memref<8x32xf32, #tpu.memory_space<vmem>>) attributes {dimension_semantics = [#tpu.dimension_semantics<parallel>, #tpu.dimension_semantics<arbitrary>], iteration_bounds = array<i64: 2, 1>, scalar_prefetch = 0 : i64, scratch_operands = 1 : i64, tpu.core_type = #tpu.core_type<tc>, window_params = [{transform_indices = @transform_0, window_bounds = array<i64: 8, 32>}, {pipeline_mode = #tpu.pipeline_mode<synchronous>, transform_indices = @transform_1, window_bounds = array<i64: 32, 128>}, {pipeline_mode = #tpu.pipeline_mode<synchronous>, transform_indices = @transform_2, window_bounds = array<i64: 1, 128>}, {pipeline_mode = #tpu.pipeline_mode<synchronous>, transform_indices = @transform_3, window_bounds = array<i64: 128, 32>}, {pipeline_mode = #tpu.pipeline_mode<synchronous>, transform_indices = @transform_4, window_bounds = array<i64: 1, 32>}, {transform_indices = @transform_5, window_bounds = array<i64: 8, 32>}]} {
    %c0_i32 = arith.constant 0 : i32
    %0 = arith.cmpi eq, %arg1, %c0_i32 : i32
    %1 = arith.extui %0 : i1 to i32
    %c0_i32_0 = arith.constant 0 : i32
    %2 = arith.cmpi ne, %1, %c0_i32_0 : i32
    scf.if %2 {
      %cst_19 = arith.constant 0.000000e+00 : f32
      %32 = vector.broadcast %cst_19 : f32 to vector<8x32xf32>
      %c0_20 = arith.constant 0 : index
      %c0_21 = arith.constant 0 : index
      %33 = vector.load %arg8[%c0_20, %c0_21] : memref<8x32xf32, #tpu.memory_space<vmem>>, vector<8x32xf32>
      tpu.vector_store %arg8[%c0_20, %c0_21], %32 {strides = array<i32>} : memref<8x32xf32, #tpu.memory_space<vmem>>, vector<8x32xf32>,
    } else {
    }
    %c0 = arith.constant 0 : index
    %c0_1 = arith.constant 0 : index
    %3 = vector.load %arg2[%c0, %c0_1] : memref<8x32xf32, #tpu.memory_space<vmem>>, vector<8x32xf32>
    %4 = arith.truncf %3 : vector<8x32xf32> to vector<8x32xbf16>
    %c0_2 = arith.constant 0 : index
    %c0_3 = arith.constant 0 : index
    %5 = vector.load %arg3[%c0_2, %c0_3] : memref<32x128xbf16, #tpu.memory_space<vmem>>, vector<32x128xbf16>
    %cst = arith.constant dense<0.000000e+00> : vector<8x128xf32>
    %6 = tpu.matmul %4, %5, %cst {dimension_numbers = #tpu.dot_dimension_numbers<[1], [0], [0], [1], [0, 0, 1, 1], [], []>} : vector<8x32xbf16>, vector<32x128xbf16>, vector<8x128xf32> -> vector<8x128xf32>
    %c0_4 = arith.constant 0 : index
    %c0_5 = arith.constant 0 : index
    %7 = vector.load %arg4[%c0_4, %c0_5] : memref<1x128xf32, #tpu.memory_space<vmem>>, vector<1x128xf32>
    %8 = vector.broadcast %7 : vector<1x128xf32> to vector<8x128xf32>
    %9 = arith.addf %6, %8 : vector<8x128xf32>
    %10 = arith.mulf %9, %9 : vector<8x128xf32>
    %11 = arith.mulf %10, %9 : vector<8x128xf32>
    %cst_6 = arith.constant 5.000000e-01 : f32
    %12 = vector.broadcast %cst_6 : f32 to vector<8x128xf32>
    %13 = arith.mulf %12, %9 : vector<8x128xf32>
    %cst_7 = arith.constant 4.471500e-02 : f32
    %14 = vector.broadcast %cst_7 : f32 to vector<8x128xf32>
    %15 = arith.mulf %14, %11 : vector<8x128xf32>
    %16 = arith.addf %9, %15 : vector<8x128xf32>
    %cst_8 = arith.constant 0.797884583 : f32
    %17 = vector.broadcast %cst_8 : f32 to vector<8x128xf32>
    %18 = arith.mulf %17, %16 : vector<8x128xf32>
    %19 = math.tanh %18 : vector<8x128xf32>
    %cst_9 = arith.constant 1.000000e+00 : f32
    %20 = vector.broadcast %cst_9 : f32 to vector<8x128xf32>
    %21 = arith.addf %20, %19 : vector<8x128xf32>
    %22 = arith.mulf %13, %21 : vector<8x128xf32>
    %c0_10 = arith.constant 0 : index
    %c0_11 = arith.constant 0 : index
    %23 = vector.load %arg8[%c0_10, %c0_11] : memref<8x32xf32, #tpu.memory_space<vmem>>, vector<8x32xf32>
    %24 = arith.truncf %22 : vector<8x128xf32> to vector<8x128xbf16>
    %c0_12 = arith.constant 0 : index
    %c0_13 = arith.constant 0 : index
    %25 = vector.load %arg5[%c0_12, %c0_13] : memref<128x32xbf16, #tpu.memory_space<vmem>>, vector<128x32xbf16>
    %cst_14 = arith.constant dense<0.000000e+00> : vector<8x32xf32>
    %26 = tpu.matmul %24, %25, %cst_14 {dimension_numbers = #tpu.dot_dimension_numbers<[1], [0], [0], [1], [0, 0, 1, 1], [], []>} : vector<8x128xbf16>, vector<128x32xbf16>, vector<8x32xf32> -> vector<8x32xf32>
    %27 = arith.addf %23, %26 : vector<8x32xf32>
    %c0_15 = arith.constant 0 : index
    %c0_16 = arith.constant 0 : index
    %28 = vector.load %arg8[%c0_15, %c0_16] : memref<8x32xf32, #tpu.memory_space<vmem>>, vector<8x32xf32>
    tpu.vector_store %arg8[%c0_15, %c0_16], %27 {strides = array<i32>} : memref<8x32xf32, #tpu.memory_space<vmem>>, vector<8x32xf32>,
    %c0_i32_17 = arith.constant 0 : i32
    %29 = arith.cmpi eq, %arg1, %c0_i32_17 : i32
    %30 = arith.extui %29 : i1 to i32
    %c0_i32_18 = arith.constant 0 : i32
    %31 = arith.cmpi ne, %30, %c0_i32_18 : i32
    scf.if %31 {
      %c0_19 = arith.constant 0 : index
      %c0_20 = arith.constant 0 : index
      %32 = vector.load %arg8[%c0_19, %c0_20] : memref<8x32xf32, #tpu.memory_space<vmem>>, vector<8x32xf32>
      %c0_21 = arith.constant 0 : index
      %c0_22 = arith.constant 0 : index
      %33 = vector.load %arg6[%c0_21, %c0_22] : memref<1x32xf32, #tpu.memory_space<vmem>>, vector<1x32xf32>
      %34 = vector.broadcast %33 : vector<1x32xf32> to vector<8x32xf32>
      %35 = arith.addf %32, %34 : vector<8x32xf32>
      %c0_23 = arith.constant 0 : index
      %c0_24 = arith.constant 0 : index
      %36 = vector.load %arg7[%c0_23, %c0_24] : memref<8x32xf32, #tpu.memory_space<vmem>>, vector<8x32xf32>
      tpu.vector_store %arg7[%c0_23, %c0_24], %35 {strides = array<i32>} : memref<8x32xf32, #tpu.memory_space<vmem>>, vector<8x32xf32>,
    } else {
    }
    return
  }
  func.func @transform_0(%arg0: i32, %arg1: i32) -> (i32, i32) {
    %c0_i32 = arith.constant 0 : i32
    %c0_i32_0 = arith.constant 0 : i32
    return %arg0, %c0_i32 : i32, i32
  }
  func.func @transform_1(%arg0: i32, %arg1: i32) -> (i32, i32) {
    %c0_i32 = arith.constant 0 : i32
    %c0_i32_0 = arith.constant 0 : i32
    return %c0_i32, %arg1 : i32, i32
  }
  func.func @transform_2(%arg0: i32, %arg1: i32) -> (i32, i32) {
    %c0_i32 = arith.constant 0 : i32
    %c0_i32_0 = arith.constant 0 : i32
    return %c0_i32, %arg1 : i32, i32
  }
  func.func @transform_3(%arg0: i32, %arg1: i32) -> (i32, i32) {
    %c0_i32 = arith.constant 0 : i32
    %c0_i32_0 = arith.constant 0 : i32
    return %arg1, %c0_i32 : i32, i32
  }
  func.func @transform_4(%arg0: i32, %arg1: i32) -> (i32, i32) {
    %c0_i32 = arith.constant 0 : i32
    %c0_i32_0 = arith.constant 0 : i32
    %c0_i32_1 = arith.constant 0 : i32
    return %c0_i32, %c0_i32_0 : i32, i32
  }
  func.func @transform_5(%arg0: i32, %arg1: i32) -> (i32, i32) {
    %c0_i32 = arith.constant 0 : i32
    %c0_i32_0 = arith.constant 0 : i32
    return %arg0, %c0_i32 : i32, i32
  }
}

</mosaic_0001>

<llo_original>
// kernel: _mlp_forward_jit.1
$region0: #{_mlp_forward_jit.1}
  #allocation0 [shape = 'u32[]', space=smem, size = 0x4, offset = 0x4, fixed_abs, tag = 'smem constant byte address 0x4 - core index']
  #allocation1 [shape = 'u32[144,128]{1,0:T(1,128)}', space=vmem, size = 0x12000, scoped, tag = 'internal scratch']
  #allocation2 [shape = 'f32[8,32]{1,0:T(8,128)}', space=vmem, size = 0x1000, scoped, tag = 'scratch operand']
  %s0 = inlined_call_operand.vmem [shape: f32[16,32], index: 0, kind: input, shape index: {}]
  %s1 = inlined_call_operand.vmem [shape: bf16[32,128], index: 1, kind: input, shape index: {}]
  %s2 = inlined_call_operand.vmem [shape: f32[1,128], index: 2, kind: input, shape index: {}]
  %s3 = inlined_call_operand.vmem [shape: bf16[128,32], index: 3, kind: input, shape index: {}]
  %s4 = inlined_call_operand.vmem [shape: f32[1,32], index: 4, kind: input, shape index: {}]
  %s5 = inlined_call_operand.hbm [shape: f32[16,32], index: 5, kind: output, shape index: {}]
  %s6 = sld [smem:[#allocation0]]
  $region61: #{_mlp_forward_jit.1} parent=0
    _
  %s8 = ssub.s32 1, %s6
  %s9 = scalar_select 0, %s8, %s6
  $region1: #{_mlp_forward_jit.1} parent=0
    #allocation3 [shape = 'u8[8192]{0}', space=vmem, size = 0x2000, scoped, tag = 'output window, operand 0']
    #allocation4 [shape = 's32[2]{0}', space=sflag, size = 0x8, scoped, tag = 'scoped memory for _mlp_forward_jit.1']
    %10 = vsyncpa [#allocation4], 0
    %s11 = scalar_lea.sflag [#allocation4], 1
    %12 = vsyncpa %s11, 0
    loop: start=0, step=1, limit=4
    $region2: #{_mlp_forward_jit.1} parent=1 // loop_pre_header
      _
    $region3: #{_mlp_forward_jit.1} parent=1 // loop_header
      %s14 = sphi 0, %s18
      %p15 = scmp.ge.s32.totalorder %s14, 4
      %s21 = sphi 0, %s33
      %s22 = sphi 0, %s29
      %s23 = sphi 0, %s21
      %s24 = sphi 0, %s22
      %s25 = sphi 0, %s23
      %s26 = sphi 0, %s24
      %s36 = sphi 0, %s38
      %s39 = sphi 0, %s36
      %s40 = sphi 0, %s39
      %s56 = sphi 0, %s40
      %s62 = sphi 0, %s64
      %s65 = sphi 0, %s62
      %s66 = sphi 0, %s65
      %s82 = sphi 0, %s66
      %s88 = sphi 0, %s90
      %s91 = sphi 0, %s88
      %s92 = sphi 0, %s91
      %s108 = sphi 0, %s92
      %s114 = sphi 0, %s116
      %s117 = sphi 0, %s114
      %s118 = sphi 0, %s117
      %s134 = sphi 0, %s118
      %s138 = sphi 0, %s138
      %s140 = sphi 0, %s138
      %s141 = sphi 0, %s140
      %s155 = sphi 0, %s141
      %s161 = sphi 0, %s163
      %s164 = sphi 0, %s161
      %s165 = sphi 0, %s164
      %s181 = sphi 0, %s165
    $region4: #{_mlp_forward_jit.1} parent=1 // loop_header_branch
      %17 = sbr.rel (%p15) target = $region8
    $region5: #{_mlp_forward_jit.1} parent=1 // loop_body
      %s19 = ssub.s32 %s14, 1
      %s20 = ssub.s32 %s14, 2
      %s27 = sadd.s32 1, %s22
      %p28 = scmp.ge.s32.totalorder %s27, 1
      %s29 = scalar_select %p28, 0, %s27
      %s30 = sadd.s32 1, %s21
      %s31 = scalar_select %p28, %s30, %s21
      %p32 = scmp.ge.s32.totalorder %s31, 2
      %s33 = scalar_select %p32, 0, %s31
      %s34 = ssub.s32 %s21, %s33
      %p35 = scmp.eq.s32.totalorder %s34, 0
      %s37 = sadd.s32 %s36, 1
      %s38 = scalar_select %p35, %s36, %s37
      %p41 = pneg %p35
      %p42 = scmp.eq.s32.totalorder %s14, 1
      %p43 = por %p41, %p42
      %p44 = scmp.ne.s32.totalorder %s36, %s39
      %p45 = scmp.eq.s32.totalorder %s14, 0
      %p46 = por %p44, %p45
      %p47 = scmp.ne.s32.totalorder %s36, %s39
      %p48 = scmp.eq.s32.totalorder %s19, 1
      %p49 = por %p47, %p48
      %p50 = scmp.ne.s32.totalorder %s39, %s40
      %p51 = scmp.eq.s32.totalorder %s19, 0
      %p52 = por %p50, %p51
      %p53 = scmp.ne.s32.totalorder %s39, %s40
      %p54 = scmp.eq.s32.totalorder %s20, 1
      %p55 = por %p53, %p54
      %p57 = scmp.ne.s32.totalorder %s40, %s56
      %p58 = scmp.eq.s32.totalorder %s20, 0
      %p59 = por %p57, %p58
      %s60 = ssub.s32 %s22, %s29
      %p61 = scmp.eq.s32.totalorder %s60, 0
      %s63 = sadd.s32 %s62, 1
      %s64 = scalar_select %p61, %s62, %s63
      %p67 = pneg %p61
      %p68 = scmp.eq.s32.totalorder %s14, 1
      %p69 = por %p67, %p68
      %p70 = scmp.ne.s32.totalorder %s62, %s65
      %p71 = scmp.eq.s32.totalorder %s14, 0
      %p72 = por %p70, %p71
      %p73 = scmp.ne.s32.totalorder %s62, %s65
      %p74 = scmp.eq.s32.totalorder %s19, 1
      %p75 = por %p73, %p74
      %p76 = scmp.ne.s32.totalorder %s65, %s66
      %p77 = scmp.eq.s32.totalorder %s19, 0
      %p78 = por %p76, %p77
      %p79 = scmp.ne.s32.totalorder %s65, %s66
      %p80 = scmp.eq.s32.totalorder %s20, 1
      %p81 = por %p79, %p80
      %p83 = scmp.ne.s32.totalorder %s66, %s82
      %p84 = scmp.eq.s32.totalorder %s20, 0
      %p85 = por %p83, %p84
      %s86 = ssub.s32 %s22, %s29
      %p87 = scmp.eq.s32.totalorder %s86, 0
      %s89 = sadd.s32 %s88, 1
      %s90 = scalar_select %p87, %s88, %s89
      %p93 = pneg %p87
      %p94 = scmp.eq.s32.totalorder %s14, 1
      %p95 = por %p93, %p94
      %p96 = scmp.ne.s32.totalorder %s88, %s91
      %p97 = scmp.eq.s32.totalorder %s14, 0
      %p98 = por %p96, %p97
      %p99 = scmp.ne.s32.totalorder %s88, %s91
      %p100 = scmp.eq.s32.totalorder %s19, 1
      %p101 = por %p99, %p100
      %p102 = scmp.ne.s32.totalorder %s91, %s92
      %p103 = scmp.eq.s32.totalorder %s19, 0
      %p104 = por %p102, %p103
      %p105 = scmp.ne.s32.totalorder %s91, %s92
      %p106 = scmp.eq.s32.totalorder %s20, 1
      %p107 = por %p105, %p106
      %p109 = scmp.ne.s32.totalorder %s92, %s108
      %p110 = scmp.eq.s32.totalorder %s20, 0
      %p111 = por %p109, %p110
      %s112 = ssub.s32 %s22, %s29
      %p113 = scmp.eq.s32.totalorder %s112, 0
      %s115 = sadd.s32 %s114, 1
      %s116 = scalar_select %p113, %s114, %s115
      %p119 = pneg %p113
      %p120 = scmp.eq.s32.totalorder %s14, 1
      %p121 = por %p119, %p120
      %p122 = scmp.ne.s32.totalorder %s114, %s117
      %p123 = scmp.eq.s32.totalorder %s14, 0
      %p124 = por %p122, %p123
      %p125 = scmp.ne.s32.totalorder %s114, %s117
      %p126 = scmp.eq.s32.totalorder %s19, 1
      %p127 = por %p125, %p126
      %p128 = scmp.ne.s32.totalorder %s117, %s118
      %p129 = scmp.eq.s32.totalorder %s19, 0
      %p130 = por %p128, %p129
      %p131 = scmp.ne.s32.totalorder %s117, %s118
      %p132 = scmp.eq.s32.totalorder %s20, 1
      %p133 = por %p131, %p132
      %p135 = scmp.ne.s32.totalorder %s118, %s134
      %p136 = scmp.eq.s32.totalorder %s20, 0
      %p137 = por %p135, %p136
      %s139 = sadd.s32 %s138, 1
      %p142 = scmp.eq.s32.totalorder %s14, 1
      %p143 = scmp.ne.s32.totalorder %s138, %s140
      %p144 = scmp.eq.s32.totalorder %s14, 0
      %p145 = por %p143, %p144
      %p146 = scmp.ne.s32.totalorder %s138, %s140
      %p147 = scmp.eq.s32.totalorder %s19, 1
      %p148 = por %p146, %p147
      %p149 = scmp.ne.s32.totalorder %s140, %s141
      %p150 = scmp.eq.s32.totalorder %s19, 0
      %p151 = por %p149, %p150
      %p152 = scmp.ne.s32.totalorder %s140, %s141
      %p153 = scmp.eq.s32.totalorder %s20, 1
      %p154 = por %p152, %p153
      %p156 = scmp.ne.s32.totalorder %s141, %s155
      %p157 = scmp.eq.s32.totalorder %s20, 0
      %p158 = por %p156, %p157
      %s159 = ssub.s32 %s21, %s33
      %p160 = scmp.eq.s32.totalorder %s159, 0
      %s162 = sadd.s32 %s161, 1
      %s163 = scalar_select %p160, %s161, %s162
      %p166 = pneg %p160
      %p167 = scmp.eq.s32.totalorder %s14, 1
      %p168 = por %p166, %p167
      %p169 = scmp.ne.s32.totalorder %s161, %s164
      %p170 = scmp.eq.s32.totalorder %s14, 0
      %p171 = por %p169, %p170
      %p172 = scmp.ne.s32.totalorder %s161, %s164
      %p173 = scmp.eq.s32.totalorder %s19, 1
      %p174 = por %p172, %p173
      %p175 = scmp.ne.s32.totalorder %s164, %s165
      %p176 = scmp.eq.s32.totalorder %s19, 0
      %p177 = por %p175, %p176
      %p178 = scmp.ne.s32.totalorder %s164, %s165
      %p179 = scmp.eq.s32.totalorder %s20, 1
      %p180 = por %p178, %p179
      %p182 = scmp.ne.s32.totalorder %s165, %s181
      %p183 = scmp.eq.s32.totalorder %s20, 0
      %p184 = por %p182, %p183
      %p185 = scmp.le.s32.totalorder 1, %s14
      %p186 = scmp.lt.s32.totalorder %s14, 3
      %p187 = pnand %p185, %p186
      %p188 = pneg %p187
      // Predicated region
      $region9: #{_mlp_forward_jit.1} parent=5 // pred_check
        _
      $region10: #{_mlp_forward_jit.1} parent=5 // pred_check_branch
        %190 = sbr.rel (%p187) target = $region12
      $region11: #{_mlp_forward_jit.1} parent=5 // pred_region
        %s191 = ssub.s32 %s14, 1
        // Predicated region
        $region13: #{_mlp_forward_jit.1} parent=11 // pred_check
          %p192 = pneg %p78
        $region14: #{_mlp_forward_jit.1} parent=11 // pred_check_branch
          %194 = sbr.rel (%p192) target = $region16
        $region15: #{_mlp_forward_jit.1} parent=11 // pred_region
          %p195 = scmp.lt.s32.totalorder %s24, 0
          %s196 = scalar_select %p195, %s24, 0
          %s197 = smul.addr %s196, 4
          %s198 = scalar_lea.vmem %s1, %s197
        $region16: #{_mlp_forward_jit.1} parent=11 // pred_fallthru
          _
        // Predicated region
        $region17: #{_mlp_forward_jit.1} parent=11 // pred_check
          %p199 = pneg %p104
        $region18: #{_mlp_forward_jit.1} parent=11 // pred_check_branch
          %201 = sbr.rel (%p199) target = $region20
        $region19: #{_mlp_forward_jit.1} parent=11 // pred_region
          %p202 = scmp.lt.s32.totalorder %s24, 0
          %s203 = scalar_select %p202, %s24, 0
          %s204 = scalar_lea.vmem %s2, %s203
        $region20: #{_mlp_forward_jit.1} parent=11 // pred_fallthru
          _
        // Predicated region
        $region21: #{_mlp_forward_jit.1} parent=11 // pred_check
          %p205 = pneg %p130
        $region22: #{_mlp_forward_jit.1} parent=11 // pred_check_branch
          %207 = sbr.rel (%p205) target = $region24
        $region23: #{_mlp_forward_jit.1} parent=11 // pred_region
          %s208 = smul.u32 16, %s24
          %p209 = scmp.lt.s32.totalorder %s208, 15
          %s210 = scalar_select %p209, %s208, 15
          %s211 = smul.addr %s210, 4
          %s212 = scalar_lea.vmem %s3, %s211
          %s213 = smul.u32 16, %s24
        $region24: #{_mlp_forward_jit.1} parent=11 // pred_fallthru
          _
        // Predicated region
        $region25: #{_mlp_forward_jit.1} parent=11 // pred_check
          %p214 = pneg %p151
        $region26: #{_mlp_forward_jit.1} parent=11 // pred_check_branch
          %216 = sbr.rel (%p214) target = $region28
        $region27: #{_mlp_forward_jit.1} parent=11 // pred_region
          _
        $region28: #{_mlp_forward_jit.1} parent=11 // pred_fallthru
          _
      $region12: #{_mlp_forward_jit.1} parent=5 // pred_fallthru
        _
      %p217 = scmp.lt.s32.totalorder %s14, 2
      // Predicated region
      $region29: #{_mlp_forward_jit.1} parent=5 // pred_check
        %p218 = pneg %p217
      $region30: #{_mlp_forward_jit.1} parent=5 // pred_check_branch
        %220 = sbr.rel (%p218) target = $region32
      $region31: #{_mlp_forward_jit.1} parent=5 // pred_region
        // Predicated region
        $region33: #{_mlp_forward_jit.1} parent=31 // pred_check
          %p221 = pneg %p46
        $region34: #{_mlp_forward_jit.1} parent=31 // pred_check_branch
          %223 = sbr.rel (%p221) target = $region36
        $region35: #{_mlp_forward_jit.1} parent=31 // pred_region
          %p224 = scmp.lt.s32.totalorder %s21, 1
          %s225 = scalar_select %p224, %s21, 1
          %s226 = smul.addr %s225, 8
          %s227 = scalar_lea.vmem %s0, %s226
        $region36: #{_mlp_forward_jit.1} parent=31 // pred_fallthru
          _
      $region32: #{_mlp_forward_jit.1} parent=5 // pred_fallthru
        _
      %p228 = scmp.le.s32.totalorder 1, %s14
      %p229 = scmp.lt.s32.totalorder %s14, 3
      %p230 = pnand %p228, %p229
      %p231 = pneg %p230
      // Predicated region
      $region37: #{_mlp_forward_jit.1} parent=5 // pred_check
        _
      $region38: #{_mlp_forward_jit.1} parent=5 // pred_check_branch
        %233 = sbr.rel (%p230) target = $region40
      $region39: #{_mlp_forward_jit.1} parent=5 // pred_region
        %s234 = ssub.s32 %s14, 1
        %p235 = scmp.lt.s32.totalorder %s23, 1
        %s236 = scalar_select %p235, %s23, 1
        %s237 = smul.addr %s236, 8
        %s238 = scalar_lea.vmem %s0, %s237
        %p239 = pneg %p52
        %p240 = pneg %p49
        %p241 = scmp.lt.s32.totalorder %s24, 0
        %s242 = scalar_select %p241, %s24, 0
        %s243 = smul.addr %s242, 4
        %s244 = scalar_lea.vmem %s1, %s243
        %p245 = pneg %p78
        %p246 = pneg %p75
        %p247 = scmp.lt.s32.totalorder %s24, 0
        %s248 = scalar_select %p247, %s24, 0
        %s249 = scalar_lea.vmem %s2, %s248
        %p250 = pneg %p104
        %p251 = pneg %p101
        %s252 = smul.u32 16, %s24
        %p253 = scmp.lt.s32.totalorder %s252, 15
        %s254 = scalar_select %p253, %s252, 15
        %s255 = smul.addr %s254, 4
        %s256 = scalar_lea.vmem %s3, %s255
        %p257 = pneg %p130
        %p258 = pneg %p127
        %p259 = pneg %p151
        %p260 = pneg %p148
        %p261 = pneg %p177
        %p262 = pneg %p174
        %s263 = sand.u32 %s164, 1
        %s264 = scalar_lea.sflag [#allocation4], %s263
        %s265 = sand.u32 %s164, 1
        %s266 = smul.addr %s265, 8
        %s267 = scalar_lea.vmem [#allocation3], %s266
        %p268 = scmp.lt.s32.totalorder %s23, 1
        %s269 = scalar_select %p268, %s23, 1
        %s270 = smul.addr %s269, 8
        %s271 = scalar_lea.vmem %s0, %s270
        %p272 = scmp.lt.s32.totalorder %s24, 0
        %s273 = scalar_select %p272, %s24, 0
        %s274 = smul.addr %s273, 4
        %s275 = scalar_lea.vmem %s1, %s274
        %p276 = scmp.lt.s32.totalorder %s24, 0
        %s277 = scalar_select %p276, %s24, 0
        %s278 = scalar_lea.vmem %s2, %s277
        %s279 = smul.u32 16, %s24
        %p280 = scmp.lt.s32.totalorder %s279, 15
        %s281 = scalar_select %p280, %s279, 15
        %s282 = smul.addr %s281, 4
        %s283 = scalar_lea.vmem %s3, %s282
        %s284 = smul.u32 16, %s24
        %p286 = scmp.eq.s32.totalorder %s24, 0
        // Predicated region
        $region41: #{_mlp_forward_jit.1} parent=39 // pred_check
          %p287 = pneg %p286
        $region42: #{_mlp_forward_jit.1} parent=39 // pred_check_branch
          %289 = sbr.rel (%p287) target = $region44
        $region43: #{_mlp_forward_jit.1} parent=39 // pred_region
          %vm290 = vcmask 261120
          %291 = vst.msk [vmem:[#allocation2] sm:$0xff] %vm290, 0.0
        $region44: #{_mlp_forward_jit.1} parent=39 // pred_fallthru
          _
        %v292 = vld [vmem:[%s271] sm:$0xff]
        %v293 = vpack.c.bf16 %v292, %v292
        %v294 = vld [vmem:[%s275] sm:$0xf]
        %v295 = vld [vmem:[%s275 + $0x4] sm:$0xf]
        %v296 = vld [vmem:[%s275 + $0x8] sm:$0xf]
        %v297 = vld [vmem:[%s275 + $0xc] sm:$0xf]
        %v298 = vld [vmem:[%s278] sm:$0x1]
        %v300 = vlaneseq
        %v301 = vshrl.u32 %v300, 7
        %v302 = vsub.s32 0, %v301
        %v303 = vrot.slane %v298, %v302
        %v309 = vunpack.c.l.b16 %v294
        %v310 = vunpack.c.l.b16 %v295
        %v311 = vunpack.c.l.b16 %v296
        %v312 = vunpack.c.l.b16 %v297
        %v313 = vpack.c.b16 %v310, %v309
        %v314 = vpack.c.b16 %v312, %v311
        %vm317 = vcmask 261120
        %v319 = vsel %vm317, %v293, 0
        %321 = vmatprep.subr.bf16.mxu0 0
        %322 = vmatpush1.bf16.msra.mxu0 0
        %323 = vmatprep.subr.bf16.mxu0 0
        %324 = vmatpush1.bf16.msra.mxu0 0
        %325 = vmatprep.subr.bf16.mxu0 0
        %326 = vmatpush1.bf16.msra.mxu0 0
        %327 = vmatprep.subr.bf16.mxu0 0
        %328 = vmatpush1.bf16.msra.mxu0 0
        %329 = vmatprep.subr.bf16.mxu0 0
        %330 = vmatpush1.bf16.msra.mxu0 0
        %331 = vmatprep.subr.bf16.mxu0 0
        %332 = vmatpush1.bf16.msra.mxu0 0
        %333 = vmatprep.subr.bf16.mxu0 0
        %334 = vmatpush1.bf16.msra.mxu0 %v314
        %335 = vmatprep.subr.bf16.mxu0 0
        %336 = vmatpush1.bf16.msra.mxu0 %v313
        %337 = vmatprep.subr.bf16.mxu0 0
        %338 = vmatpush2.bf16.msra.mxu0 0
        %339 = vmatprep.subr.bf16.mxu0 0
        %340 = vmatpush2.bf16.msra.mxu0 0
        %341 = vmatprep.subr.bf16.mxu0 0
        %342 = vmatpush2.bf16.msra.mxu0 0
        %343 = vmatprep.subr.bf16.mxu0 0
        %344 = vmatpush2.bf16.msra.mxu0 0
        %345 = vmatprep.subr.bf16.mxu0 0
        %346 = vmatpush2.bf16.msra.mxu0 0
        %347 = vmatprep.subr.bf16.mxu0 0
        %348 = vmatpush2.bf16.msra.mxu0 0
        %349 = vmatprep.subr.bf16.mxu0 0
        %350 = vmatpush2.bf16.msra.mxu0 0
        %351 = vmatprep.subr.bf16.mxu0 0
        %352 = vmatpush2.bf16.msra.mxu0 0
        %353 = vmatprep.mubr.bf16.mxu0 0
        %354 = vmatmul.mubr.bf16.gmra.mxu0 %v319
        %v355 = vpop.f32.mrf.mxu0
        %v356 = vadd.f32 %v303, %v355
        %v357 = vpop.f32.mrf.mxu0
        %v358 = vpop.f32.mrf.mxu0
        %v359 = vpop.f32.mrf.mxu0
        %360 = vdwg.mxu0
        %v361 = vmul.f32 %v356, %v356
        %v362 = vmul.f32 %v361, %v356
        %v363 = vmul.f32 %v356, 0.5
        %v364 = vmul.f32 %v362, 0.044715
        %v365 = vadd.f32 %v356, %v364
        %v366 = vmul.f32 %v365, 0.7978846
        %v367 = vtanh.pop %v366
        %v368 = vadd.f32 %v367, 1.0
        %v369 = vmul.f32 %v363, %v368
        %v370 = vld [vmem:[#allocation2] sm:$0xff]
        %v371 = vpack.c.bf16 %v369, %v369
        %v372 = vld [vmem:[%s283] sm:$0xf]
        %v373 = vld [vmem:[%s283 + $0x4] sm:$0xf]
        %v374 = vld [vmem:[%s283 + $0x8] sm:$0xf]
        %v375 = vld [vmem:[%s283 + $0xc] sm:$0xf]
        %v376 = vld [vmem:[%s283 + $0x10] sm:$0xf]
        %v377 = vld [vmem:[%s283 + $0x14] sm:$0xf]
        %v378 = vld [vmem:[%s283 + $0x18] sm:$0xf]
        %v379 = vld [vmem:[%s283 + $0x1c] sm:$0xf]
        %v380 = vld [vmem:[%s283 + $0x20] sm:$0xf]
        %v381 = vld [vmem:[%s283 + $0x24] sm:$0xf]
        %v382 = vld [vmem:[%s283 + $0x28] sm:$0xf]
        %v383 = vld [vmem:[%s283 + $0x2c] sm:$0xf]
        %v384 = vld [vmem:[%s283 + $0x30] sm:$0xf]
        %v385 = vld [vmem:[%s283 + $0x34] sm:$0xf]
        %v386 = vld [vmem:[%s283 + $0x38] sm:$0xf]
        %v387 = vld [vmem:[%s283 + $0x3c] sm:$0xf]
        %v404 = vunpack.c.l.b16 %v372
        %v405 = vunpack.c.l.b16 %v373
        %v406 = vunpack.c.l.b16 %v374
        %v407 = vunpack.c.l.b16 %v375
        %v408 = vunpack.c.l.b16 %v376
        %v409 = vunpack.c.l.b16 %v377
        %v410 = vunpack.c.l.b16 %v378
        %v411 = vunpack.c.l.b16 %v379
        %v412 = vunpack.c.l.b16 %v380
        %v413 = vunpack.c.l.b16 %v381
        %v414 = vunpack.c.l.b16 %v382
        %v415 = vunpack.c.l.b16 %v383
        %v416 = vunpack.c.l.b16 %v384
        %v417 = vunpack.c.l.b16 %v385
        %v418 = vunpack.c.l.b16 %v386
        %v419 = vunpack.c.l.b16 %v387
        %v420 = vpack.c.b16 %v405, %v404
        %v421 = vpack.c.b16 %v407, %v406
        %v422 = vpack.c.b16 %v409, %v408
        %v423 = vpack.c.b16 %v411, %v410
        %v424 = vpack.c.b16 %v413, %v412
        %v425 = vpack.c.b16 %v415, %v414
        %v426 = vpack.c.b16 %v417, %v416
        %v427 = vpack.c.b16 %v419, %v418
        %436 = vmatprep.subr.bf16.mxu0 0
        %437 = vmatpush1.bf16.msra.mxu0 %v427
        %438 = vmatprep.subr.bf16.mxu0 0
        %439 = vmatpush1.bf16.msra.mxu0 %v426
        %440 = vmatprep.subr.bf16.mxu0 0
        %441 = vmatpush1.bf16.msra.mxu0 %v425
        %442 = vmatprep.subr.bf16.mxu0 0
        %443 = vmatpush1.bf16.msra.mxu0 %v424
        %444 = vmatprep.subr.bf16.mxu0 0
        %445 = vmatpush1.bf16.msra.mxu0 %v423
        %446 = vmatprep.subr.bf16.mxu0 0
        %447 = vmatpush1.bf16.msra.mxu0 %v422
        %448 = vmatprep.subr.bf16.mxu0 0
        %449 = vmatpush1.bf16.msra.mxu0 %v421
        %450 = vmatprep.subr.bf16.mxu0 0
        %451 = vmatpush1.bf16.msra.mxu0 %v420
        %452 = vmatprep.subr.bf16.mxu0 0
        %453 = vmatpush2.bf16.msra.mxu0 0
        %454 = vmatprep.subr.bf16.mxu0 0
        %455 = vmatpush2.bf16.msra.mxu0 0
        %456 = vmatprep.subr.bf16.mxu0 0
        %457 = vmatpush2.bf16.msra.mxu0 0
        %458 = vmatprep.subr.bf16.mxu0 0
        %459 = vmatpush2.bf16.msra.mxu0 0
        %460 = vmatprep.subr.bf16.mxu0 0
        %461 = vmatpush2.bf16.msra.mxu0 0
        %462 = vmatprep.subr.bf16.mxu0 0
        %463 = vmatpush2.bf16.msra.mxu0 0
        %464 = vmatprep.subr.bf16.mxu0 0
        %465 = vmatpush2.bf16.msra.mxu0 0
        %466 = vmatprep.subr.bf16.mxu0 0
        %467 = vmatpush2.bf16.msra.mxu0 0
        %468 = vmatprep.mubr.bf16.mxu0 0
        %469 = vmatmul.mubr.bf16.gmra.mxu0 %v371
        %v470 = vpop.f32.mrf.mxu0
        %v471 = vadd.f32 0.0, %v470
        %v472 = vpop.f32.mrf.mxu0
        %v473 = vpop.f32.mrf.mxu0
        %v474 = vpop.f32.mrf.mxu0
        %475 = vdwg.mxu0
        %v476 = vadd.f32 %v370, %v471
        %477 = vst.msk [vmem:[#allocation2] sm:$0xff] %vm317, %v476
        // Predicated region
        $region45: #{_mlp_forward_jit.1} parent=39 // pred_check
          %p478 = pneg %p286
        $region46: #{_mlp_forward_jit.1} parent=39 // pred_check_branch
          %480 = sbr.rel (%p478) target = $region48
        $region47: #{_mlp_forward_jit.1} parent=39 // pred_region
          %v481 = vld [vmem:[#allocation2] sm:$0xff]
          %v482 = vld [vmem:[%s4] sm:$0x1]
          %v484 = vlaneseq
          %v485 = vshrl.u32 %v484, 7
          %v486 = vsub.s32 0, %v485
          %v487 = vrot.slane %v482, %v486
          %v489 = vadd.f32 %v481, %v487
          %490 = vst.msk [vmem:[%s267] sm:$0xff] %vm317, %v489
        $region48: #{_mlp_forward_jit.1} parent=39 // pred_fallthru
          _
        %s491 = sand.u32 %s164, 1
        %s492 = scalar_lea.sflag [#allocation4], %s491
        %s493 = sand.u32 %s164, 1
        %s494 = smul.addr %s493, 8
        %s495 = scalar_lea.vmem [#allocation3], %s494
        // Predicated region
        $region49: #{_mlp_forward_jit.1} parent=39 // pred_check
          %p496 = pneg %p174
        $region50: #{_mlp_forward_jit.1} parent=39 // pred_check_branch
          %498 = sbr.rel (%p496) target = $region52
        $region51: #{_mlp_forward_jit.1} parent=39 // pred_region
          %s500 = ssub.s32 128, 128
          %501 = vsyncadd %s492, %s500
          %s502 = smul.addr %s23, 128
          %s503 = scalar_lea.hbm %s5, %s502
          %s505 = sshll.u32 %s495, 4
          %s506 = int_to_ptr.vmem [resolvable:$true] %s505
          %508 = dma.vmem_to_hbm [thread:$0]  %s506, 128, %s503, %s492
        $region52: #{_mlp_forward_jit.1} parent=39 // pred_fallthru
          _
      $region40: #{_mlp_forward_jit.1} parent=5 // pred_fallthru
        _
      %p509 = scmp.le.s32.totalorder 2, %s14
      // Predicated region
      $region53: #{_mlp_forward_jit.1} parent=5 // pred_check
        %p510 = pneg %p509
      $region54: #{_mlp_forward_jit.1} parent=5 // pred_check_branch
        %512 = sbr.rel (%p510) target = $region56
      $region55: #{_mlp_forward_jit.1} parent=5 // pred_region
        %s513 = ssub.s32 %s14, 2
        // Predicated region
        $region57: #{_mlp_forward_jit.1} parent=55 // pred_check
          %p514 = pneg %p180
        $region58: #{_mlp_forward_jit.1} parent=55 // pred_check_branch
          %516 = sbr.rel (%p514) target = $region60
        $region59: #{_mlp_forward_jit.1} parent=55 // pred_region
          %s517 = sand.u32 %s165, 1
          %s518 = scalar_lea.sflag [#allocation4], %s517
          %s519 = sand.u32 %s165, 1
          %s520 = smul.addr %s519, 8
          %s521 = scalar_lea.vmem [#allocation3], %s520
          %522 = dma.done %s518, 128
        $region60: #{_mlp_forward_jit.1} parent=55 // pred_fallthru
          _
      $region56: #{_mlp_forward_jit.1} parent=5 // pred_fallthru
        _
    $region6: #{_mlp_forward_jit.1} parent=1 // loop_footer
      %s18 = sadd.s32 1, %s14
    $region7: #{_mlp_forward_jit.1} parent=1 // loop_footer_branch
      %13 = sbr.rel target = $region3
    $region8: #{_mlp_forward_jit.1} parent=1 // loop_exit
      _
    %523 = vsyncpa [#allocation4], 1
    %s524 = scalar_lea.sflag [#allocation4], 1
    %525 = vsyncpa %s524, 1

</llo_original>
